<compile_context>
chip_gen: v5e
topology: v5e:2x2
jax: 0.10.0
libtpu: 0.0.40
codegen_flags: <defaults>
</compile_context>

<pallas_src>
import functools

import jax
import jax.numpy as jnp
from jax.experimental import pallas as pl
from jax.experimental.pallas import tpu as pltpu

_BN_EPS = 1e-5
_LANE = 128
_PACK_WIDTH = 256  # >= max(fan_out)=256 and >= padded head width (128)


def encoder_kernel(x_ref, w03_ref, w4_ref, wh_ref, p_ref, out_ref, *,
                   dims, z_dim, out_width):
    """Fused 5x(Linear -> BN(train) -> ReLU) -> fused [mu | softplus(var)] head.

    x_ref   : [n, dims[0]]          f32
    w03_ref : [dims[0], 4*hidden]   bf16, layers 0..3 packed side-by-side in lanes
    w4_ref  : [hidden, 256]         bf16
    wh_ref  : [256, out_width]      bf16, [w_mu | w_var | zero pad] (lane-dense)
    p_ref   : [11, _PACK_WIDTH]     f32; rows 2l/2l+1 = gamma_l/beta_l, row 10 = head bias (padded)
    out_ref : [n, out_width]        f32; cols [0,z_dim)=mu, [z_dim,2*z_dim)=softplus(var)
    """
    hidden = dims[1]
    p = p_ref[...]
    h = x_ref[...]                                        # f32 activations

    for l in range(5):
        fan_out = dims[l + 1]
        if l < 4:
            w = w03_ref[:, l * hidden:(l + 1) * hidden]   # static lane slice, bf16
        else:
            w = w4_ref[...]
        # Linear; hidden-layer bias omitted (canceled exactly by BN mean subtraction).
        # bf16 MXU operands, f32 accumulation.
        y = jnp.dot(h.astype(jnp.bfloat16), w, preferred_element_type=jnp.float32)

        # BatchNorm1d training mode: batch mean / biased batch variance (f32).
        mean = jnp.mean(y, axis=0, keepdims=True)
        yc = y - mean
        var = jnp.mean(yc * yc, axis=0, keepdims=True)
        gamma = p[2 * l: 2 * l + 1, :fan_out]
        beta = p[2 * l + 1: 2 * l + 2, :fan_out]
        # Fold gamma into the [1, fan_out] scale before broadcasting.
        scale = gamma * jax.lax.rsqrt(var + _BN_EPS)
        h = jnp.maximum(yc * scale + beta, 0.0)

    # Fused heads: one matmul into a lane-dense [n, out_width] tile.
    b_heads = p[10:11, :out_width]
    heads = jnp.dot(h.astype(jnp.bfloat16), wh_ref[...],
                    preferred_element_type=jnp.float32) + b_heads
    # Numerically stable softplus applied to the var half via a lane mask.
    # Padded lanes (>= 2*z_dim) end up as softplus(0)=log 2; sliced off outside.
    sp = jnp.maximum(heads, 0.0) + jnp.log1p(jnp.exp(-jnp.abs(heads)))
    col = jax.lax.broadcasted_iota(jnp.int32, heads.shape, 1)
    out_ref[...] = jnp.where(col < z_dim, heads, sp).astype(out_ref.dtype)


@functools.partial(jax.jit, static_argnames=("dims", "z_dim"))
def encoder_forward(x, w03, w4, w_heads, packed, *, dims, z_dim):
    n = x.shape[0]
    out_width = w_heads.shape[-1]
    vmem = pl.BlockSpec(memory_space=pltpu.MemorySpace.VMEM)

    matmul_flops = 2 * n * (sum(dims[i] * dims[i + 1] for i in range(5))
                            + dims[5] * out_width)
    bytes_accessed = (4 * (x.size + packed.size + n * out_width)
                      + 2 * (w03.size + w4.size + w_heads.size))
    transcendentals = sum(dims[1:]) + 2 * n * out_width   # rsqrt per BN feature + softplus

    out = pl.pallas_call(
        functools.partial(encoder_kernel, dims=dims, z_dim=z_dim, out_width=out_width),
        out_shape=jax.ShapeDtypeStruct((n, out_width), jnp.float32),
        in_specs=[vmem] * 5,
        out_specs=vmem,
        compiler_params=pltpu.CompilerParams(vmem_limit_bytes=16 * 1024 * 1024),
        cost_estimate=pl.CostEstimate(flops=matmul_flops,
                                      transcendentals=transcendentals,
                                      bytes_accessed=bytes_accessed),
    )(x, w03, w4, w_heads, packed)
    return out[:, :z_dim], out[:, z_dim:2 * z_dim]


def init_params(key, inp_dim, out_dim, hidden_dim, z_dim):
    """Deterministic synthetic f32 parameters (same shapes as the PyTorch module)."""
    dims = (inp_dim + out_dim, hidden_dim, hidden_dim, hidden_dim, hidden_dim, 256)
    keys = jax.random.split(key, 14)
    ki = 0
    weights, biases, gammas, betas = [], [], [], []
    for l in range(5):
        fi, fo = dims[l], dims[l + 1]
        weights.append(jax.random.normal(keys[ki], (fi, fo), jnp.float32) * 0.1); ki += 1
        # Hidden-layer biases exist only for the reference model: they are
        # mathematically canceled by the following train-mode BatchNorm.
        biases.append(jax.random.normal(keys[ki], (1, fo), jnp.float32) * 0.01); ki += 1
        gammas.append(jnp.ones((1, fo), jnp.float32))   # PyTorch BN default init
        betas.append(jnp.zeros((1, fo), jnp.float32))
    wmu = jax.random.normal(keys[ki], (256, z_dim), jnp.float32) * 0.1; ki += 1
    bmu = jax.random.normal(keys[ki], (1, z_dim), jnp.float32) * 0.01; ki += 1
    wvar = jax.random.normal(keys[ki], (256, z_dim), jnp.float32) * 0.1; ki += 1
    bvar = jax.random.normal(keys[ki], (1, z_dim), jnp.float32) * 0.01; ki += 1
    w_heads = jnp.concatenate([wmu, wvar], axis=-1)     # [256, 2*z_dim]
    b_heads = jnp.concatenate([bmu, bvar], axis=-1)     # [1, 2*z_dim]
    return dims, weights, biases, gammas, betas, w_heads, b_heads


def pack_kernel_params(dims, weights, gammas, betas, w_heads, b_heads):
    """Build the dense kernel operands: packed bf16 weights + one [11,256] f32 param slab."""
    hidden = dims[1]
    assert dims[0] == hidden and all(w.shape == (hidden, hidden) for w in weights[:4]), \
        "lane-packing of w0..w3 requires inp_dim + out_dim == hidden_dim"
    w03 = jnp.concatenate(weights[:4], axis=-1).astype(jnp.bfloat16)   # [hidden, 4*hidden]
    w4 = weights[4].astype(jnp.bfloat16)                               # [hidden, 256]

    two_z = w_heads.shape[-1]
    out_width = max(_LANE, ((two_z + _LANE - 1) // _LANE) * _LANE)     # lane-dense output
    w_heads_p = jnp.pad(w_heads, ((0, 0), (0, out_width - two_z))).astype(jnp.bfloat16)
    b_heads_p = jnp.pad(b_heads, ((0, 0), (0, out_width - two_z)))

    rows = []
    for g, b in zip(gammas, betas):
        rows.append(jnp.pad(g, ((0, 0), (0, _PACK_WIDTH - g.shape[-1]))))
        rows.append(jnp.pad(b, ((0, 0), (0, _PACK_WIDTH - b.shape[-1]))))
    rows.append(jnp.pad(b_heads_p, ((0, 0), (0, _PACK_WIDTH - out_width))))
    packed = jnp.concatenate(rows, axis=0)                             # [11, 256] f32
    return w03, w4, w_heads_p, packed


def encoder_reference(x, weights, biases, gammas, betas, w_heads, b_heads, z_dim):
    """Pure-JAX f32 replica of the PyTorch forward (hidden-layer biases kept)."""
    h = x
    for w, b, g, bt in zip(weights, biases, gammas, betas):
        y = h @ w + b
        mean = jnp.mean(y, axis=0, keepdims=True)
        var = jnp.mean((y - mean) ** 2, axis=0, keepdims=True)
        h = jnp.maximum((y - mean) * jax.lax.rsqrt(var + _BN_EPS) * g + bt, 0.0)
    heads = h @ w_heads + b_heads
    mu, v = heads[:, :z_dim], heads[:, z_dim:]
    return mu, jnp.maximum(v, 0.0) + jnp.log1p(jnp.exp(-jnp.abs(v)))


if __name__ == "__main__":
    # Small shapes consistent with the module's forward: x : [batch, inp_dim + out_dim]
    inp_dim, out_dim, hidden_dim, z_dim = 16, 16, 32, 8
    batch = 8   # train-mode BN requires batch >= 2

    key = jax.random.PRNGKey(0)
    kx, kp = jax.random.split(key)
    x = jax.random.normal(kx, (batch, inp_dim + out_dim), jnp.float32)
    dims, weights, biases, gammas, betas, w_heads, b_heads = init_params(
        kp, inp_dim, out_dim, hidden_dim, z_dim)
    w03, w4, w_heads_p, packed = pack_kernel_params(
        dims, weights, gammas, betas, w_heads, b_heads)

    mu, var = encoder_forward(x, w03, w4, w_heads_p, packed, dims=dims, z_dim=z_dim)
    jax.block_until_ready((mu, var))

    mu_ref, var_ref = encoder_reference(x, weights, biases, gammas, betas,
                                        w_heads, b_heads, z_dim)

    assert mu.shape == (batch, z_dim) and var.shape == (batch, z_dim)
    assert bool(jnp.all(var >= 0.0))                      # softplus output >= 0
    assert bool(jnp.all(jnp.isfinite(mu))) and bool(jnp.all(jnp.isfinite(var)))
    # Tolerances absorb bf16 MXU operands (f32 accumulation).
    assert bool(jnp.allclose(mu, mu_ref, atol=5e-2, rtol=5e-2))
    assert bool(jnp.allclose(var, var_ref, atol=5e-2, rtol=5e-2))
    print("KERNEL_OK")
</pallas_src>

<mosaic_0001>
module attributes {stable_mosaic.version = 11 : i64} {
  func.func @encoder_kernel(%arg0: memref<8x32xf32, #tpu.memory_space<vmem>>, %arg1: memref<32x128xbf16, #tpu.memory_space<vmem>>, %arg2: memref<32x256xbf16, #tpu.memory_space<vmem>>, %arg3: memref<256x128xbf16, #tpu.memory_space<vmem>>, %arg4: memref<11x256xf32, #tpu.memory_space<vmem>>, %arg5: memref<8x128xf32, #tpu.memory_space<vmem>>) attributes {dimension_semantics = [], scalar_prefetch = 0 : i64, scratch_operands = 0 : i64, tpu.core_type = #tpu.core_type<tc>} {
    %c0 = arith.constant 0 : index
    %c0_0 = arith.constant 0 : index
    %0 = vector.load %arg4[%c0, %c0_0] : memref<11x256xf32, #tpu.memory_space<vmem>>, vector<11x256xf32>
    %c0_1 = arith.constant 0 : index
    %c0_2 = arith.constant 0 : index
    %1 = vector.load %arg0[%c0_1, %c0_2] : memref<8x32xf32, #tpu.memory_space<vmem>>, vector<8x32xf32>
    %c0_3 = arith.constant 0 : index
    %c0_4 = arith.constant 0 : index
    %2 = vector.load %arg1[%c0_3, %c0_4] : memref<32x128xbf16, #tpu.memory_space<vmem>>, vector<32x32xbf16>
    %3 = arith.truncf %1 : vector<8x32xf32> to vector<8x32xbf16>
    %cst = arith.constant dense<0.000000e+00> : vector<8x32xf32>
    %4 = tpu.matmul %3, %2, %cst {dimension_numbers = #tpu.dot_dimension_numbers<[1], [0], [0], [1], [0, 0, 1, 1], [], []>} : vector<8x32xbf16>, vector<32x32xbf16>, vector<8x32xf32> -> vector<8x32xf32>
    %cst_5 = arith.constant dense<0.000000e+00> : vector<32xf32>
    %5 = vector.multi_reduction <add>, %4, %cst_5 [0] : vector<8x32xf32> to vector<32xf32>
    %6 = vector.shape_cast %5 : vector<32xf32> to vector<1x32xf32>
    %cst_6 = arith.constant 8.000000e+00 : f32
    %7 = vector.broadcast %cst_6 : f32 to vector<1x32xf32>
    %8 = arith.divf %6, %7 : vector<1x32xf32>
    %9 = vector.broadcast %8 : vector<1x32xf32> to vector<8x32xf32>
    %10 = arith.subf %4, %9 : vector<8x32xf32>
    %11 = arith.mulf %10, %10 : vector<8x32xf32>
    %cst_7 = arith.constant dense<0.000000e+00> : vector<32xf32>
    %12 = vector.multi_reduction <add>, %11, %cst_7 [0] : vector<8x32xf32> to vector<32xf32>
    %13 = vector.shape_cast %12 : vector<32xf32> to vector<1x32xf32>
    %cst_8 = arith.constant 8.000000e+00 : f32
    %14 = vector.broadcast %cst_8 : f32 to vector<1x32xf32>
    %15 = arith.divf %13, %14 : vector<1x32xf32>
    %16 = vector.extract_strided_slice %0 {offsets = [0, 0], sizes = [1, 32], strides = [1, 1]} : vector<11x256xf32> to vector<1x32xf32>
    %17 = vector.extract_strided_slice %0 {offsets = [1, 0], sizes = [1, 32], strides = [1, 1]} : vector<11x256xf32> to vector<1x32xf32>
    %cst_9 = arith.constant 9.99999974E-6 : f32
    %18 = vector.broadcast %cst_9 : f32 to vector<1x32xf32>
    %19 = arith.addf %15, %18 : vector<1x32xf32>
    %20 = math.rsqrt %19 : vector<1x32xf32>
    %21 = arith.mulf %16, %20 : vector<1x32xf32>
    %22 = vector.broadcast %21 : vector<1x32xf32> to vector<8x32xf32>
    %23 = arith.mulf %10, %22 : vector<8x32xf32>
    %24 = vector.broadcast %17 : vector<1x32xf32> to vector<8x32xf32>
    %25 = arith.addf %23, %24 : vector<8x32xf32>
    %cst_10 = arith.constant 0.000000e+00 : f32
    %26 = vector.broadcast %cst_10 : f32 to vector<8x32xf32>
    %27 = arith.maximumf %25, %26 : vector<8x32xf32>
    %c0_11 = arith.constant 0 : index
    %c32 = arith.constant 32 : index
    %28 = vector.load %arg1[%c0_11, %c32] : memref<32x128xbf16, #tpu.memory_space<vmem>>, vector<32x32xbf16>
    %29 = arith.truncf %27 : vector<8x32xf32> to vector<8x32xbf16>
    %cst_12 = arith.constant dense<0.000000e+00> : vector<8x32xf32>
    %30 = tpu.matmul %29, %28, %cst_12 {dimension_numbers = #tpu.dot_dimension_numbers<[1], [0], [0], [1], [0, 0, 1, 1], [], []>} : vector<8x32xbf16>, vector<32x32xbf16>, vector<8x32xf32> -> vector<8x32xf32>
    %cst_13 = arith.constant dense<0.000000e+00> : vector<32xf32>
    %31 = vector.multi_reduction <add>, %30, %cst_13 [0] : vector<8x32xf32> to vector<32xf32>
    %32 = vector.shape_cast %31 : vector<32xf32> to vector<1x32xf32>
    %cst_14 = arith.constant 8.000000e+00 : f32
    %33 = vector.broadcast %cst_14 : f32 to vector<1x32xf32>
    %34 = arith.divf %32, %33 : vector<1x32xf32>
    %35 = vector.broadcast %34 : vector<1x32xf32> to vector<8x32xf32>
    %36 = arith.subf %30, %35 : vector<8x32xf32>
    %37 = arith.mulf %36, %36 : vector<8x32xf32>
    %cst_15 = arith.constant dense<0.000000e+00> : vector<32xf32>
    %38 = vector.multi_reduction <add>, %37, %cst_15 [0] : vector<8x32xf32> to vector<32xf32>
    %39 = vector.shape_cast %38 : vector<32xf32> to vector<1x32xf32>
    %cst_16 = arith.constant 8.000000e+00 : f32
    %40 = vector.broadcast %cst_16 : f32 to vector<1x32xf32>
    %41 = arith.divf %39, %40 : vector<1x32xf32>
    %42 = vector.extract_strided_slice %0 {offsets = [2, 0], sizes = [1, 32], strides = [1, 1]} : vector<11x256xf32> to vector<1x32xf32>
    %43 = vector.extract_strided_slice %0 {offsets = [3, 0], sizes = [1, 32], strides = [1, 1]} : vector<11x256xf32> to vector<1x32xf32>
    %cst_17 = arith.constant 9.99999974E-6 : f32
    %44 = vector.broadcast %cst_17 : f32 to vector<1x32xf32>
    %45 = arith.addf %41, %44 : vector<1x32xf32>
    %46 = math.rsqrt %45 : vector<1x32xf32>
    %47 = arith.mulf %42, %46 : vector<1x32xf32>
    %48 = vector.broadcast %47 : vector<1x32xf32> to vector<8x32xf32>
    %49 = arith.mulf %36, %48 : vector<8x32xf32>
    %50 = vector.broadcast %43 : vector<1x32xf32> to vector<8x32xf32>
    %51 = arith.addf %49, %50 : vector<8x32xf32>
    %cst_18 = arith.constant 0.000000e+00 : f32
    %52 = vector.broadcast %cst_18 : f32 to vector<8x32xf32>
    %53 = arith.maximumf %51, %52 : vector<8x32xf32>
    %c0_19 = arith.constant 0 : index
    %c64 = arith.constant 64 : index
    %54 = vector.load %arg1[%c0_19, %c64] : memref<32x128xbf16, #tpu.memory_space<vmem>>, vector<32x32xbf16>
    %55 = arith.truncf %53 : vector<8x32xf32> to vector<8x32xbf16>
    %cst_20 = arith.constant dense<0.000000e+00> : vector<8x32xf32>
    %56 = tpu.matmul %55, %54, %cst_20 {dimension_numbers = #tpu.dot_dimension_numbers<[1], [0], [0], [1], [0, 0, 1, 1], [], []>} : vector<8x32xbf16>, vector<32x32xbf16>, vector<8x32xf32> -> vector<8x32xf32>
    %cst_21 = arith.constant dense<0.000000e+00> : vector<32xf32>
    %57 = vector.multi_reduction <add>, %56, %cst_21 [0] : vector<8x32xf32> to vector<32xf32>
    %58 = vector.shape_cast %57 : vector<32xf32> to vector<1x32xf32>
    %cst_22 = arith.constant 8.000000e+00 : f32
    %59 = vector.broadcast %cst_22 : f32 to vector<1x32xf32>
    %60 = arith.divf %58, %59 : vector<1x32xf32>
    %61 = vector.broadcast %60 : vector<1x32xf32> to vector<8x32xf32>
    %62 = arith.subf %56, %61 : vector<8x32xf32>
    %63 = arith.mulf %62, %62 : vector<8x32xf32>
    %cst_23 = arith.constant dense<0.000000e+00> : vector<32xf32>
    %64 = vector.multi_reduction <add>, %63, %cst_23 [0] : vector<8x32xf32> to vector<32xf32>
    %65 = vector.shape_cast %64 : vector<32xf32> to vector<1x32xf32>
    %cst_24 = arith.constant 8.000000e+00 : f32
    %66 = vector.broadcast %cst_24 : f32 to vector<1x32xf32>
    %67 = arith.divf %65, %66 : vector<1x32xf32>
    %68 = vector.extract_strided_slice %0 {offsets = [4, 0], sizes = [1, 32], strides = [1, 1]} : vector<11x256xf32> to vector<1x32xf32>
    %69 = vector.extract_strided_slice %0 {offsets = [5, 0], sizes = [1, 32], strides = [1, 1]} : vector<11x256xf32> to vector<1x32xf32>
    %cst_25 = arith.constant 9.99999974E-6 : f32
    %70 = vector.broadcast %cst_25 : f32 to vector<1x32xf32>
    %71 = arith.addf %67, %70 : vector<1x32xf32>
    %72 = math.rsqrt %71 : vector<1x32xf32>
    %73 = arith.mulf %68, %72 : vector<1x32xf32>
    %74 = vector.broadcast %73 : vector<1x32xf32> to vector<8x32xf32>
    %75 = arith.mulf %62, %74 : vector<8x32xf32>
    %76 = vector.broadcast %69 : vector<1x32xf32> to vector<8x32xf32>
    %77 = arith.addf %75, %76 : vector<8x32xf32>
    %cst_26 = arith.constant 0.000000e+00 : f32
    %78 = vector.broadcast %cst_26 : f32 to vector<8x32xf32>
    %79 = arith.maximumf %77, %78 : vector<8x32xf32>
    %c0_27 = arith.constant 0 : index
    %c96 = arith.constant 96 : index
    %80 = vector.load %arg1[%c0_27, %c96] : memref<32x128xbf16, #tpu.memory_space<vmem>>, vector<32x32xbf16>
    %81 = arith.truncf %79 : vector<8x32xf32> to vector<8x32xbf16>
    %cst_28 = arith.constant dense<0.000000e+00> : vector<8x32xf32>
    %82 = tpu.matmul %81, %80, %cst_28 {dimension_numbers = #tpu.dot_dimension_numbers<[1], [0], [0], [1], [0, 0, 1, 1], [], []>} : vector<8x32xbf16>, vector<32x32xbf16>, vector<8x32xf32> -> vector<8x32xf32>
    %cst_29 = arith.constant dense<0.000000e+00> : vector<32xf32>
    %83 = vector.multi_reduction <add>, %82, %cst_29 [0] : vector<8x32xf32> to vector<32xf32>
    %84 = vector.shape_cast %83 : vector<32xf32> to vector<1x32xf32>
    %cst_30 = arith.constant 8.000000e+00 : f32
    %85 = vector.broadcast %cst_30 : f32 to vector<1x32xf32>
    %86 = arith.divf %84, %85 : vector<1x32xf32>
    %87 = vector.broadcast %86 : vector<1x32xf32> to vector<8x32xf32>
    %88 = arith.subf %82, %87 : vector<8x32xf32>
    %89 = arith.mulf %88, %88 : vector<8x32xf32>
    %cst_31 = arith.constant dense<0.000000e+00> : vector<32xf32>
    %90 = vector.multi_reduction <add>, %89, %cst_31 [0] : vector<8x32xf32> to vector<32xf32>
    %91 = vector.shape_cast %90 : vector<32xf32> to vector<1x32xf32>
    %cst_32 = arith.constant 8.000000e+00 : f32
    %92 = vector.broadcast %cst_32 : f32 to vector<1x32xf32>
    %93 = arith.divf %91, %92 : vector<1x32xf32>
    %94 = vector.extract_strided_slice %0 {offsets = [6, 0], sizes = [1, 32], strides = [1, 1]} : vector<11x256xf32> to vector<1x32xf32>
    %95 = vector.extract_strided_slice %0 {offsets = [7, 0], sizes = [1, 32], strides = [1, 1]} : vector<11x256xf32> to vector<1x32xf32>
    %cst_33 = arith.constant 9.99999974E-6 : f32
    %96 = vector.broadcast %cst_33 : f32 to vector<1x32xf32>
    %97 = arith.addf %93, %96 : vector<1x32xf32>
    %98 = math.rsqrt %97 : vector<1x32xf32>
    %99 = arith.mulf %94, %98 : vector<1x32xf32>
    %100 = vector.broadcast %99 : vector<1x32xf32> to vector<8x32xf32>
    %101 = arith.mulf %88, %100 : vector<8x32xf32>
    %102 = vector.broadcast %95 : vector<1x32xf32> to vector<8x32xf32>
    %103 = arith.addf %101, %102 : vector<8x32xf32>
    %cst_34 = arith.constant 0.000000e+00 : f32
    %104 = vector.broadcast %cst_34 : f32 to vector<8x32xf32>
    %105 = arith.maximumf %103, %104 : vector<8x32xf32>
    %c0_35 = arith.constant 0 : index
    %c0_36 = arith.constant 0 : index
    %106 = vector.load %arg2[%c0_35, %c0_36] : memref<32x256xbf16, #tpu.memory_space<vmem>>, vector<32x256xbf16>
    %107 = arith.truncf %105 : vector<8x32xf32> to vector<8x32xbf16>
    %cst_37 = arith.constant dense<0.000000e+00> : vector<8x256xf32>
    %108 = tpu.matmul %107, %106, %cst_37 {dimension_numbers = #tpu.dot_dimension_numbers<[1], [0], [0], [1], [0, 0, 1, 1], [], []>} : vector<8x32xbf16>, vector<32x256xbf16>, vector<8x256xf32> -> vector<8x256xf32>
    %cst_38 = arith.constant dense<0.000000e+00> : vector<256xf32>
    %109 = vector.multi_reduction <add>, %108, %cst_38 [0] : vector<8x256xf32> to vector<256xf32>
    %110 = vector.shape_cast %109 : vector<256xf32> to vector<1x256xf32>
    %cst_39 = arith.constant 8.000000e+00 : f32
    %111 = vector.broadcast %cst_39 : f32 to vector<1x256xf32>
    %112 = arith.divf %110, %111 : vector<1x256xf32>
    %113 = vector.broadcast %112 : vector<1x256xf32> to vector<8x256xf32>
    %114 = arith.subf %108, %113 : vector<8x256xf32>
    %115 = arith.mulf %114, %114 : vector<8x256xf32>
    %cst_40 = arith.constant dense<0.000000e+00> : vector<256xf32>
    %116 = vector.multi_reduction <add>, %115, %cst_40 [0] : vector<8x256xf32> to vector<256xf32>
    %117 = vector.shape_cast %116 : vector<256xf32> to vector<1x256xf32>
    %cst_41 = arith.constant 8.000000e+00 : f32
    %118 = vector.broadcast %cst_41 : f32 to vector<1x256xf32>
    %119 = arith.divf %117, %118 : vector<1x256xf32>
    %120 = vector.extract_strided_slice %0 {offsets = [8, 0], sizes = [1, 256], strides = [1, 1]} : vector<11x256xf32> to vector<1x256xf32>
    %121 = vector.extract_strided_slice %0 {offsets = [9, 0], sizes = [1, 256], strides = [1, 1]} : vector<11x256xf32> to vector<1x256xf32>
    %cst_42 = arith.constant 9.99999974E-6 : f32
    %122 = vector.broadcast %cst_42 : f32 to vector<1x256xf32>
    %123 = arith.addf %119, %122 : vector<1x256xf32>
    %124 = math.rsqrt %123 : vector<1x256xf32>
    %125 = arith.mulf %120, %124 : vector<1x256xf32>
    %126 = vector.broadcast %125 : vector<1x256xf32> to vector<8x256xf32>
    %127 = arith.mulf %114, %126 : vector<8x256xf32>
    %128 = vector.broadcast %121 : vector<1x256xf32> to vector<8x256xf32>
    %129 = arith.addf %127, %128 : vector<8x256xf32>
    %cst_43 = arith.constant 0.000000e+00 : f32
    %130 = vector.broadcast %cst_43 : f32 to vector<8x256xf32>
    %131 = arith.maximumf %129, %130 : vector<8x256xf32>
    %132 = vector.extract_strided_slice %0 {offsets = [10, 0], sizes = [1, 128], strides = [1, 1]} : vector<11x256xf32> to vector<1x128xf32>
    %133 = arith.truncf %131 : vector<8x256xf32> to vector<8x256xbf16>
    %c0_44 = arith.constant 0 : index
    %c0_45 = arith.constant 0 : index
    %134 = vector.load %arg3[%c0_44, %c0_45] : memref<256x128xbf16, #tpu.memory_space<vmem>>, vector<256x128xbf16>
    %cst_46 = arith.constant dense<0.000000e+00> : vector<8x128xf32>
    %135 = tpu.matmul %133, %134, %cst_46 {dimension_numbers = #tpu.dot_dimension_numbers<[1], [0], [0], [1], [0, 0, 1, 1], [], []>} : vector<8x256xbf16>, vector<256x128xbf16>, vector<8x128xf32> -> vector<8x128xf32>
    %136 = vector.broadcast %132 : vector<1x128xf32> to vector<8x128xf32>
    %137 = arith.addf %135, %136 : vector<8x128xf32>
    %cst_47 = arith.constant 0.000000e+00 : f32
    %138 = vector.broadcast %cst_47 : f32 to vector<8x128xf32>
    %139 = arith.maximumf %137, %138 : vector<8x128xf32>
    %140 = math.absf %137 : vector<8x128xf32>
    %cst_48 = arith.constant 0.000000e+00 : f32
    %141 = vector.broadcast %cst_48 : f32 to vector<8x128xf32>
    %142 = arith.subf %141, %140 : vector<8x128xf32>
    %143 = math.exp %142 : vector<8x128xf32>
    %144 = math.log1p %143 : vector<8x128xf32>
    %145 = arith.addf %139, %144 : vector<8x128xf32>
    %146 = tpu.iota {dimensions = array<i32: 1>} : vector<8x128xi32>
    %c8_i32 = arith.constant 8 : i32
    %147 = vector.broadcast %c8_i32 : i32 to vector<8x128xi32>
    %148 = arith.cmpi slt, %146, %147 : vector<8x128xi32>
    %149 = arith.select %148, %137, %145 : vector<8x128xi1>, vector<8x128xf32>
    %c0_49 = arith.constant 0 : index
    %c0_50 = arith.constant 0 : index
    %150 = vector.load %arg5[%c0_49, %c0_50] : memref<8x128xf32, #tpu.memory_space<vmem>>, vector<8x128xf32>
    tpu.vector_store %arg5[%c0_49, %c0_50], %149 {strides = array<i32>} : memref<8x128xf32, #tpu.memory_space<vmem>>, vector<8x128xf32>,
    return
  }
}

</mosaic_0001>

<llo_original>
// kernel: encoder_forward.1
$region0: #{encoder_forward.1}
  #allocation0 [shape = 'u32[]', space=smem, size = 0x4, offset = 0x4, fixed_abs, tag = 'smem constant byte address 0x4 - core index']
  #allocation1 [shape = 'u32[72,128]{1,0:T(1,128)}', space=vmem, size = 0x9000, scoped, tag = 'internal scratch']
  %s0 = inlined_call_operand.hbm [shape: f32[8,32], index: 0, kind: input, shape index: {}]
  %s1 = inlined_call_operand.hbm [shape: bf16[32,128], index: 1, kind: input, shape index: {}]
  %s2 = inlined_call_operand.hbm [shape: bf16[32,256], index: 2, kind: input, shape index: {}]
  %s3 = inlined_call_operand.hbm [shape: bf16[256,128], index: 3, kind: input, shape index: {}]
  %s4 = inlined_call_operand.hbm [shape: f32[11,256], index: 4, kind: input, shape index: {}]
  %s5 = inlined_call_operand.vmem [shape: f32[8,128], index: 5, kind: output, shape index: {}]
  %s6 = sld [smem:[#allocation0]]
  $region50: #{encoder_forward.1} parent=0
    _
  %s8 = ssub.s32 1, %s6
  %s9 = scalar_select 0, %s8, %s6
  $region1: #{encoder_forward.1} parent=0
    #allocation2 [shape = 'u8[4096]{0}', space=vmem, size = 0x1000, scoped, tag = 'input window, operand 0, single buffered']
    #allocation3 [shape = 's32[1]{0}', space=sflag, size = 0x4, scoped, tag = 'scoped memory for encoder_forward.1']
    #allocation4 [shape = 'u8[8192]{0}', space=vmem, size = 0x2000, scoped, tag = 'input window, operand 1, single buffered']
    #allocation5 [shape = 's32[1]{0}', space=sflag, size = 0x4, scoped, tag = 'scoped memory for encoder_forward.1']
    #allocation6 [shape = 'u8[16384]{0}', space=vmem, size = 0x4000, scoped, tag = 'input window, operand 2, single buffered']
    #allocation7 [shape = 'u8[65536]{0}', space=vmem, size = 0x10000, scoped, tag = 'input window, operand 3, single buffered']
    #allocation8 [shape = 's32[1]{0}', space=sflag, size = 0x4, scoped, tag = 'scoped memory for encoder_forward.1']
    #allocation9 [shape = 'u8[16384]{0}', space=vmem, size = 0x4000, scoped, tag = 'input window, operand 4, single buffered']
    %10 = vsyncpa [#allocation3], 0
    %11 = vsyncpa [#allocation5], 0
    %12 = vsyncpa [#allocation8], 0
    // Predicated region
    $region2: #{encoder_forward.1} parent=1 // pred_check
      _
    $region3: #{encoder_forward.1} parent=1 // pred_check_branch
      %14 = sbr.rel (0) target = $region5
    $region4: #{encoder_forward.1} parent=1 // pred_region
      %16 = vsyncadd [#allocation3], 0
      %s18 = sshll.u32 %s0, 4
      %s19 = int_to_ptr.hbm [resolvable:$true] %s18
      %s20 = sshll.u32 [#allocation2], 4
      %s21 = int_to_ptr.vmem [resolvable:$true] %s20
      %23 = dma.hbm_to_vmem [thread:$0]  %s19, 128, %s21, [#allocation3]
    $region5: #{encoder_forward.1} parent=1 // pred_fallthru
      _
    // Predicated region
    $region6: #{encoder_forward.1} parent=1 // pred_check
      _
    $region7: #{encoder_forward.1} parent=1 // pred_check_branch
      %25 = sbr.rel (0) target = $region9
    $region8: #{encoder_forward.1} parent=1 // pred_region
      %27 = vsyncadd [#allocation5], 0
      %s28 = sshll.u32 %s1, 4
      %s29 = int_to_ptr.hbm [resolvable:$true] %s28
      %s30 = sshll.u32 [#allocation4], 4
      %s31 = int_to_ptr.vmem [resolvable:$true] %s30
      %36 = dma.hbm_to_vmem [thread:$0]  %s29, 256, %s31, [#allocation5], 64, 64, 4
    $region9: #{encoder_forward.1} parent=1 // pred_fallthru
      _
    // Predicated region
    $region10: #{encoder_forward.1} parent=1 // pred_check
      _
    $region11: #{encoder_forward.1} parent=1 // pred_check_branch
      %38 = sbr.rel (0) target = $region13
    $region12: #{encoder_forward.1} parent=1 // pred_region
      %40 = vsyncadd [#allocation5], 0
      %s41 = sshll.u32 %s2, 4
      %s42 = int_to_ptr.hbm [resolvable:$true] %s41
      %s43 = sshll.u32 [#allocation6], 4
      %s44 = int_to_ptr.vmem [resolvable:$true] %s43
      %49 = dma.hbm_to_vmem [thread:$0]  %s42, 512, %s44, [#allocation5], 128, 128, 8
    $region13: #{encoder_forward.1} parent=1 // pred_fallthru
      _
    // Predicated region
    $region14: #{encoder_forward.1} parent=1 // pred_check
      _
    $region15: #{encoder_forward.1} parent=1 // pred_check_branch
      %51 = sbr.rel (0) target = $region17
    $region16: #{encoder_forward.1} parent=1 // pred_region
      %53 = vsyncadd [#allocation8], 0
      %s54 = sshll.u32 %s3, 4
      %s55 = int_to_ptr.hbm [resolvable:$true] %s54
      %s56 = sshll.u32 [#allocation7], 4
      %s57 = int_to_ptr.vmem [resolvable:$true] %s56
      %62 = dma.hbm_to_vmem [thread:$0]  %s55, 2048, %s57, [#allocation8], 64, 64, 4
    $region17: #{encoder_forward.1} parent=1 // pred_fallthru
      _
    // Predicated region
    $region18: #{encoder_forward.1} parent=1 // pred_check
      _
    $region19: #{encoder_forward.1} parent=1 // pred_check_branch
      %64 = sbr.rel (0) target = $region21
    $region20: #{encoder_forward.1} parent=1 // pred_region
      %66 = vsyncadd [#allocation8], 0
      %s67 = sshll.u32 %s4, 4
      %s68 = int_to_ptr.hbm [resolvable:$true] %s67
      %s69 = sshll.u32 [#allocation9], 4
      %s70 = int_to_ptr.vmem [resolvable:$true] %s69
      %75 = dma.hbm_to_vmem [thread:$0]  %s68, 512, %s70, [#allocation8], 256, 256, 16
    $region21: #{encoder_forward.1} parent=1 // pred_fallthru
      _
    // Predicated region
    $region22: #{encoder_forward.1} parent=1 // pred_check
      _
    $region23: #{encoder_forward.1} parent=1 // pred_check_branch
      %77 = sbr.rel (0) target = $region25
    $region24: #{encoder_forward.1} parent=1 // pred_region
      %79 = dma.done [#allocation3], 128
    $region25: #{encoder_forward.1} parent=1 // pred_fallthru
      _
    // Predicated region
    $region26: #{encoder_forward.1} parent=1 // pred_check
      _
    $region27: #{encoder_forward.1} parent=1 // pred_check_branch
      %81 = sbr.rel (0) target = $region29
    $region28: #{encoder_forward.1} parent=1 // pred_region
      %83 = dma.done [#allocation5], 256
    $region29: #{encoder_forward.1} parent=1 // pred_fallthru
      _
    // Predicated region
    $region30: #{encoder_forward.1} parent=1 // pred_check
      _
    $region31: #{encoder_forward.1} parent=1 // pred_check_branch
      %85 = sbr.rel (0) target = $region33
    $region32: #{encoder_forward.1} parent=1 // pred_region
      %87 = dma.done [#allocation5], 512
    $region33: #{encoder_forward.1} parent=1 // pred_fallthru
      _
    // Predicated region
    $region34: #{encoder_forward.1} parent=1 // pred_check
      _
    $region35: #{encoder_forward.1} parent=1 // pred_check_branch
      %89 = sbr.rel (0) target = $region37
    $region36: #{encoder_forward.1} parent=1 // pred_region
      %91 = dma.done [#allocation8], 2048
    $region37: #{encoder_forward.1} parent=1 // pred_fallthru
      _
    // Predicated region
    $region38: #{encoder_forward.1} parent=1 // pred_check
      _
    $region39: #{encoder_forward.1} parent=1 // pred_check_branch
      %93 = sbr.rel (0) target = $region41
    $region40: #{encoder_forward.1} parent=1 // pred_region
      %95 = dma.done [#allocation8], 512
    $region41: #{encoder_forward.1} parent=1 // pred_fallthru
      _
    %v97 = vld [vmem:[#allocation9] sm:$0xff]
    %v98 = vld [vmem:[#allocation9 + $0x10] sm:$0x7]
    %v99 = vld [vmem:[#allocation9 + $0x18] sm:$0x7]
    %v100 = vld [vmem:[#allocation2] sm:$0xff]
    %v101 = vld [vmem:[#allocation4] sm:$0xf]
    %v102 = vld [vmem:[#allocation4 + $0x4] sm:$0xf]
    %v103 = vld [vmem:[#allocation4 + $0x8] sm:$0xf]
    %v104 = vld [vmem:[#allocation4 + $0xc] sm:$0xf]
    %v105 = vpack.c.bf16 %v100, %v100
    %v110 = vunpack.c.l.b16 %v101
    %v111 = vunpack.c.l.b16 %v102
    %v112 = vunpack.c.l.b16 %v103
    %v113 = vunpack.c.l.b16 %v104
    %v114 = vpack.c.b16 %v111, %v110
    %v115 = vpack.c.b16 %v113, %v112
    %vm118 = vcmask 261120
    %v120 = vsel %vm118, %v105, 0
    %122 = vmatpush.bf16.msra.mxu0 0
    %123 = vmatpush.bf16.msra.mxu0 0
    %124 = vmatpush.bf16.msra.mxu0 0
    %125 = vmatpush.bf16.msra.mxu0 0
    %126 = vmatpush.bf16.msra.mxu0 0
    %127 = vmatpush.bf16.msra.mxu0 0
    %128 = vmatpush.bf16.msra.mxu0 %v115
    %129 = vmatpush.bf16.msra.mxu0 %v114
    %130 = vmatmul.bf16.gmra.mxu0 %v120
    %v131 = vpop.f32.mrf.mxu0
    %v132 = vadd.f32 0.0, %v131
    %v133 = vpop.f32.mrf.mxu0
    %134 = vdwg.mxu0
    %v135 = vsel %vm118, %v132, 0.0
    %v136 = vrot.slane %v135, 4
    %v137 = vadd.f32 %v135, %v136
    %v138 = vrot.slane %v137, 2
    %v139 = vadd.f32 %v137, %v138
    %v140 = vrot.slane %v139, 1
    %v141 = vadd.f32 %v139, %v140
    %v142 = vrcp.pop 8.0
    %v143 = vmul.f32 8.0, %v142
    %v144 = vsub.f32 1.0, %v143
    %v145 = vmul.f32 %v142, %v144
    %v146 = vadd.f32 %v142, %v145
    %vm147 = vweird.f32 %v142
    %v148 = vsel %vm147, %v142, %v146
    %v149 = vmul.f32 %v141, %v148
    %v150 = vsub.f32 %v132, %v149
    %v151 = vmul.f32 %v150, %v150
    %v152 = vsel %vm118, %v151, 0.0
    %v153 = vrot.slane %v152, 4
    %v154 = vadd.f32 %v152, %v153
    %v155 = vrot.slane %v154, 2
    %v156 = vadd.f32 %v154, %v155
    %v157 = vrot.slane %v156, 1
    %v158 = vadd.f32 %v156, %v157
    %v159 = vmul.f32 %v158, %v148
    %v160 = vadd.f32 %v159, 1e-05
    %v161 = vrsqrt.pop %v160
    %v162 = vmul.f32 %v161, %v160
    %v163 = vmul.f32 %v162, %v161
    %v164 = vmul.f32 0.5, %v163
    %v165 = vsub.f32 1.5, %v164
    %v166 = vmul.f32 %v161, %v165
    %vm167 = vweird.f32 %v160
    %vm168 = vweird.f32 %v161
    %vm169 = vmor %vm167, %vm168
    %v170 = vsel %vm169, %v161, %v166
    %v171 = vmul.f32 %v97, %v170
    %v172 = vperm.slane %v171, 0
    %v173 = vmul.f32 %v150, %v172
    %v174 = vperm.slane %v97, 1
    %v175 = vadd.f32 %v173, %v174
    %v176 = vmax.f32 %v175, 0.0
    %v177 = vpack.c.bf16 %v176, %v176
    %178 = vrot.lane.b32.xlu0 %v114, 96
    %v179 = vpop.permute.xlu0 %178
    %180 = vrot.lane.b32.xlu0 %v115, 96
    %v181 = vpop.permute.xlu0 %180
    %v185 = vsel %vm118, %v177, 0
    %187 = vmatpush.bf16.msra.mxu0 0
    %188 = vmatpush.bf16.msra.mxu0 0
    %189 = vmatpush.bf16.msra.mxu0 0
    %190 = vmatpush.bf16.msra.mxu0 0
    %191 = vmatpush.bf16.msra.mxu0 0
    %192 = vmatpush.bf16.msra.mxu0 0
    %193 = vmatpush.bf16.msra.mxu0 %v181
    %194 = vmatpush.bf16.msra.mxu0 %v179
    %195 = vmatmul.bf16.gmra.mxu0 %v185
    %v196 = vpop.f32.mrf.mxu0
    %v197 = vadd.f32 0.0, %v196
    %v198 = vpop.f32.mrf.mxu0
    %199 = vdwg.mxu0
    %v200 = vsel %vm118, %v197, 0.0
    %v201 = vrot.slane %v200, 4
    %v202 = vadd.f32 %v200, %v201
    %v203 = vrot.slane %v202, 2
    %v204 = vadd.f32 %v202, %v203
    %v205 = vrot.slane %v204, 1
    %v206 = vadd.f32 %v204, %v205
    %v207 = vmul.f32 %v206, %v148
    %v208 = vsub.f32 %v197, %v207
    %v209 = vmul.f32 %v208, %v208
    %v210 = vsel %vm118, %v209, 0.0
    %v211 = vrot.slane %v210, 4
    %v212 = vadd.f32 %v210, %v211
    %v213 = vrot.slane %v212, 2
    %v214 = vadd.f32 %v212, %v213
    %v215 = vrot.slane %v214, 1
    %v216 = vadd.f32 %v214, %v215
    %v217 = vmul.f32 %v216, %v148
    %v218 = vadd.f32 %v217, 1e-05
    %v219 = vrsqrt.pop %v218
    %v220 = vmul.f32 %v219, %v218
    %v221 = vmul.f32 %v220, %v219
    %v222 = vmul.f32 0.5, %v221
    %v223 = vsub.f32 1.5, %v222
    %v224 = vmul.f32 %v219, %v223
    %vm225 = vweird.f32 %v218
    %vm226 = vweird.f32 %v219
    %vm227 = vmor %vm225, %vm226
    %v228 = vsel %vm227, %v219, %v224
    %v229 = vmul.f32 %v97, %v228
    %v230 = vperm.slane %v229, 2
    %v231 = vmul.f32 %v208, %v230
    %v232 = vperm.slane %v97, 3
    %v233 = vadd.f32 %v231, %v232
    %v234 = vmax.f32 %v233, 0.0
    %v235 = vpack.c.bf16 %v234, %v234
    %236 = vrot.lane.b32.xlu0 %v114, 64
    %v237 = vpop.permute.xlu0 %236
    %238 = vrot.lane.b32.xlu0 %v115, 64
    %v239 = vpop.permute.xlu0 %238
    %v243 = vsel %vm118, %v235, 0
    %245 = vmatpush.bf16.msra.mxu0 0
    %246 = vmatpush.bf16.msra.mxu0 0
    %247 = vmatpush.bf16.msra.mxu0 0
    %248 = vmatpush.bf16.msra.mxu0 0
    %249 = vmatpush.bf16.msra.mxu0 0
    %250 = vmatpush.bf16.msra.mxu0 0
    %251 = vmatpush.bf16.msra.mxu0 %v239
    %252 = vmatpush.bf16.msra.mxu0 %v237
    %253 = vmatmul.bf16.gmra.mxu0 %v243
    %v254 = vpop.f32.mrf.mxu0
    %v255 = vadd.f32 0.0, %v254
    %v256 = vpop.f32.mrf.mxu0
    %257 = vdwg.mxu0
    %v258 = vsel %vm118, %v255, 0.0
    %v259 = vrot.slane %v258, 4
    %v260 = vadd.f32 %v258, %v259
    %v261 = vrot.slane %v260, 2
    %v262 = vadd.f32 %v260, %v261
    %v263 = vrot.slane %v262, 1
    %v264 = vadd.f32 %v262, %v263
    %v265 = vmul.f32 %v264, %v148
    %v266 = vsub.f32 %v255, %v265
    %v267 = vmul.f32 %v266, %v266
    %v268 = vsel %vm118, %v267, 0.0
    %v269 = vrot.slane %v268, 4
    %v270 = vadd.f32 %v268, %v269
    %v271 = vrot.slane %v270, 2
    %v272 = vadd.f32 %v270, %v271
    %v273 = vrot.slane %v272, 1
    %v274 = vadd.f32 %v272, %v273
    %v275 = vmul.f32 %v274, %v148
    %v276 = vadd.f32 %v275, 1e-05
    %v277 = vrsqrt.pop %v276
    %v278 = vmul.f32 %v277, %v276
    %v279 = vmul.f32 %v278, %v277
    %v280 = vmul.f32 0.5, %v279
    %v281 = vsub.f32 1.5, %v280
    %v282 = vmul.f32 %v277, %v281
    %vm283 = vweird.f32 %v276
    %vm284 = vweird.f32 %v277
    %vm285 = vmor %vm283, %vm284
    %v286 = vsel %vm285, %v277, %v282
    %v287 = vmul.f32 %v97, %v286
    %v288 = vperm.slane %v287, 4
    %v289 = vmul.f32 %v266, %v288
    %v290 = vperm.slane %v97, 5
    %v291 = vadd.f32 %v289, %v290
    %v292 = vmax.f32 %v291, 0.0
    %v293 = vpack.c.bf16 %v292, %v292
    %294 = vrot.lane.b32.xlu0 %v114, 32
    %v295 = vpop.permute.xlu0 %294
    %296 = vrot.lane.b32.xlu0 %v115, 32
    %v297 = vpop.permute.xlu0 %296
    %v301 = vsel %vm118, %v293, 0
    %303 = vmatpush.bf16.msra.mxu0 0
    %304 = vmatpush.bf16.msra.mxu0 0
    %305 = vmatpush.bf16.msra.mxu0 0
    %306 = vmatpush.bf16.msra.mxu0 0
    %307 = vmatpush.bf16.msra.mxu0 0
    %308 = vmatpush.bf16.msra.mxu0 0
    %309 = vmatpush.bf16.msra.mxu0 %v297
    %310 = vmatpush.bf16.msra.mxu0 %v295
    %311 = vmatmul.bf16.gmra.mxu0 %v301
    %v312 = vpop.f32.mrf.mxu0
    %v313 = vadd.f32 0.0, %v312
    %v314 = vpop.f32.mrf.mxu0
    %315 = vdwg.mxu0
    %v316 = vsel %vm118, %v313, 0.0
    %v317 = vrot.slane %v316, 4
    %v318 = vadd.f32 %v316, %v317
    %v319 = vrot.slane %v318, 2
    %v320 = vadd.f32 %v318, %v319
    %v321 = vrot.slane %v320, 1
    %v322 = vadd.f32 %v320, %v321
    %v323 = vmul.f32 %v322, %v148
    %v324 = vsub.f32 %v313, %v323
    %v325 = vmul.f32 %v324, %v324
    %v326 = vsel %vm118, %v325, 0.0
    %v327 = vrot.slane %v326, 4
    %v328 = vadd.f32 %v326, %v327
    %v329 = vrot.slane %v328, 2
    %v330 = vadd.f32 %v328, %v329
    %v331 = vrot.slane %v330, 1
    %v332 = vadd.f32 %v330, %v331
    %v333 = vmul.f32 %v332, %v148
    %v334 = vadd.f32 %v333, 1e-05
    %v335 = vrsqrt.pop %v334
    %v336 = vmul.f32 %v335, %v334
    %v337 = vmul.f32 %v336, %v335
    %v338 = vmul.f32 0.5, %v337
    %v339 = vsub.f32 1.5, %v338
    %v340 = vmul.f32 %v335, %v339
    %vm341 = vweird.f32 %v334
    %vm342 = vweird.f32 %v335
    %vm343 = vmor %vm341, %vm342
    %v344 = vsel %vm343, %v335, %v340
    %v345 = vmul.f32 %v97, %v344
    %v346 = vperm.slane %v345, 6
    %v347 = vmul.f32 %v324, %v346
    %v348 = vperm.slane %v97, 7
    %v349 = vadd.f32 %v347, %v348
    %v350 = vmax.f32 %v349, 0.0
    %v351 = vld [vmem:[#allocation6] sm:$0xff]
    %v352 = vld [vmem:[#allocation6 + $0x8] sm:$0xff]
    %v353 = vld [vmem:[#allocation6 + $0x10] sm:$0xff]
    %v354 = vld [vmem:[#allocation6 + $0x18] sm:$0xff]
    %v355 = vpack.c.bf16 %v350, %v350
    %v360 = vunpack.c.l.b16 %v351
    %v361 = vunpack.c.h.b16 %v351
    %v362 = vunpack.c.l.b16 %v352
    %v363 = vunpack.c.h.b16 %v352
    %v364 = vunpack.c.l.b16 %v353
    %v365 = vunpack.c.h.b16 %v353
    %v366 = vunpack.c.l.b16 %v354
    %v367 = vunpack.c.h.b16 %v354
    %v368 = vpack.c.b16 %v362, %v360
    %v369 = vpack.c.b16 %v363, %v361
    %v370 = vpack.c.b16 %v366, %v364
    %v371 = vpack.c.b16 %v367, %v365
    %v377 = vsel %vm118, %v355, 0
    %379 = vmatpush.bf16.msra.mxu0 0
    %380 = vmatpush.bf16.msra.mxu0 0
    %381 = vmatpush.bf16.msra.mxu0 0
    %382 = vmatpush.bf16.msra.mxu0 0
    %383 = vmatpush.bf16.msra.mxu0 0
    %384 = vmatpush.bf16.msra.mxu0 0
    %385 = vmatpush.bf16.msra.mxu0 %v370
    %386 = vmatpush.bf16.msra.mxu0 %v368
    %387 = vmatmul.bf16.gmra.mxu0 %v377
    %v388 = vpop.f32.mrf.mxu0
    %v389 = vadd.f32 0.0, %v388
    %v390 = vpop.f32.mrf.mxu0
    %391 = vdwg.mxu0
    %392 = vmatpush.bf16.msra.mxu0 0
    %393 = vmatpush.bf16.msra.mxu0 0
    %394 = vmatpush.bf16.msra.mxu0 0
    %395 = vmatpush.bf16.msra.mxu0 0
    %396 = vmatpush.bf16.msra.mxu0 0
    %397 = vmatpush.bf16.msra.mxu0 0
    %398 = vmatpush.bf16.msra.mxu0 %v371
    %399 = vmatpush.bf16.msra.mxu0 %v369
    %400 = vmatmul.bf16.gmra.mxu0 %v377
    %v401 = vpop.f32.mrf.mxu0
    %v402 = vadd.f32 0.0, %v401
    %v403 = vpop.f32.mrf.mxu0
    %404 = vdwg.mxu0
    %v405 = vrot.slane %v389, 4
    %v406 = vadd.f32 %v389, %v405
    %v407 = vrot.slane %v406, 2
    %v408 = vadd.f32 %v406, %v407
    %v409 = vrot.slane %v408, 1
    %v410 = vadd.f32 %v408, %v409
    %v411 = vrot.slane %v402, 4
    %v412 = vadd.f32 %v402, %v411
    %v413 = vrot.slane %v412, 2
    %v414 = vadd.f32 %v412, %v413
    %v415 = vrot.slane %v414, 1
    %v416 = vadd.f32 %v414, %v415
    %v417 = vmul.f32 %v410, %v148
    %v418 = vmul.f32 %v416, %v148
    %v419 = vsub.f32 %v389, %v417
    %v420 = vsub.f32 %v402, %v418
    %v421 = vmul.f32 %v419, %v419
    %v422 = vmul.f32 %v420, %v420
    %v423 = vrot.slane %v421, 4
    %v424 = vadd.f32 %v421, %v423
    %v425 = vrot.slane %v424, 2
    %v426 = vadd.f32 %v424, %v425
    %v427 = vrot.slane %v426, 1
    %v428 = vadd.f32 %v426, %v427
    %v429 = vrot.slane %v422, 4
    %v430 = vadd.f32 %v422, %v429
    %v431 = vrot.slane %v430, 2
    %v432 = vadd.f32 %v430, %v431
    %v433 = vrot.slane %v432, 1
    %v434 = vadd.f32 %v432, %v433
    %v435 = vmul.f32 %v428, %v148
    %v436 = vmul.f32 %v434, %v148
    %v437 = vadd.f32 %v435, 1e-05
    %v438 = vadd.f32 %v436, 1e-05
    %v439 = vrsqrt.pop %v437
    %v440 = vmul.f32 %v439, %v437
    %v441 = vmul.f32 %v440, %v439
    %v442 = vmul.f32 0.5, %v441
    %v443 = vsub.f32 1.5, %v442
    %v444 = vmul.f32 %v439, %v443
    %vm445 = vweird.f32 %v437
    %vm446 = vweird.f32 %v439
    %vm447 = vmor %vm445, %vm446
    %v448 = vsel %vm447, %v439, %v444
    %v449 = vrsqrt.pop %v438
    %v450 = vmul.f32 %v449, %v438
    %v451 = vmul.f32 %v450, %v449
    %v452 = vmul.f32 0.5, %v451
    %v453 = vsub.f32 1.5, %v452
    %v454 = vmul.f32 %v449, %v453
    %vm455 = vweird.f32 %v438
    %vm456 = vweird.f32 %v449
    %vm457 = vmor %vm455, %vm456
    %v458 = vsel %vm457, %v449, %v454
    %v459 = vmul.f32 %v98, %v448
    %v460 = vmul.f32 %v99, %v458
    %v461 = vperm.slane %v459, 0
    %v462 = vperm.slane %v460, 0
    %v463 = vmul.f32 %v419, %v461
    %v464 = vmul.f32 %v420, %v462
    %v465 = vperm.slane %v98, 1
    %v466 = vperm.slane %v99, 1
    %v467 = vadd.f32 %v463, %v465
    %v468 = vadd.f32 %v464, %v466
    %v469 = vmax.f32 %v467, 0.0
    %v470 = vmax.f32 %v468, 0.0
    %v471 = vpack.c.bf16 %v469, %v469
    %v472 = vpack.c.bf16 %v470, %v470
    %v473 = vld [vmem:[#allocation7] sm:$0xf]
    %v474 = vld [vmem:[#allocation7 + $0x4] sm:$0xf]
    %v475 = vld [vmem:[#allocation7 + $0x8] sm:$0xf]
    %v476 = vld [vmem:[#allocation7 + $0xc] sm:$0xf]
    %v477 = vld [vmem:[#allocation7 + $0x10] sm:$0xf]
    %v478 = vld [vmem:[#allocation7 + $0x14] sm:$0xf]
    %v479 = vld [vmem:[#allocation7 + $0x18] sm:$0xf]
    %v480 = vld [vmem:[#allocation7 + $0x1c] sm:$0xf]
    %v481 = vld [vmem:[#allocation7 + $0x20] sm:$0xf]
    %v482 = vld [vmem:[#allocation7 + $0x24] sm:$0xf]
    %v483 = vld [vmem:[#allocation7 + $0x28] sm:$0xf]
    %v484 = vld [vmem:[#allocation7 + $0x2c] sm:$0xf]
    %v485 = vld [vmem:[#allocation7 + $0x30] sm:$0xf]
    %v486 = vld [vmem:[#allocation7 + $0x34] sm:$0xf]
    %v487 = vld [vmem:[#allocation7 + $0x38] sm:$0xf]
    %v488 = vld [vmem:[#allocation7 + $0x3c] sm:$0xf]
    %v489 = vld [vmem:[#allocation7 + $0x40] sm:$0xf]
    %v490 = vld [vmem:[#allocation7 + $0x44] sm:$0xf]
    %v491 = vld [vmem:[#allocation7 + $0x48] sm:$0xf]
    %v492 = vld [vmem:[#allocation7 + $0x4c] sm:$0xf]
    %v493 = vld [vmem:[#allocation7 + $0x50] sm:$0xf]
    %v494 = vld [vmem:[#allocation7 + $0x54] sm:$0xf]
    %v495 = vld [vmem:[#allocation7 + $0x58] sm:$0xf]
    %v496 = vld [vmem:[#allocation7 + $0x5c] sm:$0xf]
    %v497 = vld [vmem:[#allocation7 + $0x60] sm:$0xf]
    %v498 = vld [vmem:[#allocation7 + $0x64] sm:$0xf]
    %v499 = vld [vmem:[#allocation7 + $0x68] sm:$0xf]
    %v500 = vld [vmem:[#allocation7 + $0x6c] sm:$0xf]
    %v501 = vld [vmem:[#allocation7 + $0x70] sm:$0xf]
    %v502 = vld [vmem:[#allocation7 + $0x74] sm:$0xf]
    %v503 = vld [vmem:[#allocation7 + $0x78] sm:$0xf]
    %v504 = vld [vmem:[#allocation7 + $0x7c] sm:$0xf]
    %v505 = vperm.slane %v98, 2
    %v538 = vunpack.c.l.b16 %v473
    %v539 = vunpack.c.l.b16 %v474
    %v540 = vunpack.c.l.b16 %v475
    %v541 = vunpack.c.l.b16 %v476
    %v542 = vunpack.c.l.b16 %v477
    %v543 = vunpack.c.l.b16 %v478
    %v544 = vunpack.c.l.b16 %v479
    %v545 = vunpack.c.l.b16 %v480
    %v546 = vunpack.c.l.b16 %v481
    %v547 = vunpack.c.l.b16 %v482
    %v548 = vunpack.c.l.b16 %v483
    %v549 = vunpack.c.l.b16 %v484
    %v550 = vunpack.c.l.b16 %v485
    %v551 = vunpack.c.l.b16 %v486
    %v552 = vunpack.c.l.b16 %v487
    %v553 = vunpack.c.l.b16 %v488
    %v554 = vunpack.c.l.b16 %v489
    %v555 = vunpack.c.l.b16 %v490
    %v556 = vunpack.c.l.b16 %v491
    %v557 = vunpack.c.l.b16 %v492
    %v558 = vunpack.c.l.b16 %v493
    %v559 = vunpack.c.l.b16 %v494
    %v560 = vunpack.c.l.b16 %v495
    %v561 = vunpack.c.l.b16 %v496
    %v562 = vunpack.c.l.b16 %v497
    %v563 = vunpack.c.l.b16 %v498
    %v564 = vunpack.c.l.b16 %v499
    %v565 = vunpack.c.l.b16 %v500
    %v566 = vunpack.c.l.b16 %v501
    %v567 = vunpack.c.l.b16 %v502
    %v568 = vunpack.c.l.b16 %v503
    %v569 = vunpack.c.l.b16 %v504
    %v570 = vpack.c.b16 %v539, %v538
    %v571 = vpack.c.b16 %v541, %v540
    %v572 = vpack.c.b16 %v543, %v542
    %v573 = vpack.c.b16 %v545, %v544
    %v574 = vpack.c.b16 %v547, %v546
    %v575 = vpack.c.b16 %v549, %v548
    %v576 = vpack.c.b16 %v551, %v550
    %v577 = vpack.c.b16 %v553, %v552
    %v578 = vpack.c.b16 %v555, %v554
    %v579 = vpack.c.b16 %v557, %v556
    %v580 = vpack.c.b16 %v559, %v558
    %v581 = vpack.c.b16 %v561, %v560
    %v582 = vpack.c.b16 %v563, %v562
    %v583 = vpack.c.b16 %v565, %v564
    %v584 = vpack.c.b16 %v567, %v566
    %v585 = vpack.c.b16 %v569, %v568
    %602 = vmatpush.bf16.msra.mxu0 %v577
    %603 = vmatpush.bf16.msra.mxu0 %v576
    %604 = vmatpush.bf16.msra.mxu0 %v575
    %605 = vmatpush.bf16.msra.mxu0 %v574
    %606 = vmatpush.bf16.msra.mxu0 %v573
    %607 = vmatpush.bf16.msra.mxu0 %v572
    %608 = vmatpush.bf16.msra.mxu0 %v571
    %609 = vmatpush.bf16.msra.mxu0 %v570
    %610 = vmatmul.bf16.gmra.mxu0 %v471
    %v611 = vpop.f32.mrf.mxu0
    %v612 = vadd.f32 %v505, %v611
    %v613 = vpop.f32.mrf.mxu0
    %614 = vdwg.mxu0
    %615 = vmatpush.bf16.msra.mxu0 %v585
    %616 = vmatpush.bf16.msra.mxu0 %v584
    %617 = vmatpush.bf16.msra.mxu0 %v583
    %618 = vmatpush.bf16.msra.mxu0 %v582
    %619 = vmatpush.bf16.msra.mxu0 %v581
    %620 = vmatpush.bf16.msra.mxu0 %v580
    %621 = vmatpush.bf16.msra.mxu0 %v579
    %622 = vmatpush.bf16.msra.mxu0 %v578
    %623 = vmatmul.bf16.gmra.mxu0 %v472
    %v624 = vpop.f32.mrf.mxu0
    %v625 = vadd.f32 %v612, %v624
    %v626 = vpop.f32.mrf.mxu0
    %627 = vdwg.mxu0
    %v628 = vmax.f32 %v625, 0.0
    %v629 = vand.u32 2147483647, %v625
    %v630 = vsub.f32 0.0, %v629
    %v631 = vmul.f32 %v630, 1.442695
    %v632 = vpow.pop %v631
    %v633 = vadd.f32 %v632, 1.0
    %v634 = vlog2.pop %v633
    %v635 = vmul.f32 %v634, 0.6931472
    %v636 = vmul.f32 -0.5, %v632
    %v637 = vadd.f32 %v636, 1.0
    %v638 = vmul.f32 %v637, %v632
    %v639 = vand.u32 2147483647, %v632
    %vm640 = vcmp.lt.f32.partialorder %v639, 0.0004427343
    %v641 = vsel %vm640, %v638, %v635
    %v642 = vadd.f32 %v628, %v641
    %v643 = vlaneseq
    %v644 = vand.u32 %v643, 127
    %vm645 = vcmp.lt.s32.totalorder %v644, 8
    %v646 = vsel %vm645, %v625, %v642
    %647 = vst [vmem:[%s5] sm:$0xff] %v646
    // Predicated region
    $region42: #{encoder_forward.1} parent=1 // pred_check
      _
    $region43: #{encoder_forward.1} parent=1 // pred_check_branch
      %649 = sbr.rel (0) target = $region45
    $region44: #{encoder_forward.1} parent=1 // pred_region
      _
    $region45: #{encoder_forward.1} parent=1 // pred_fallthru
      _
    // Predicated region
    $region46: #{encoder_forward.1} parent=1 // pred_check
      _
    $region47: #{encoder_forward.1} parent=1 // pred_check_branch
      %651 = sbr.rel (0) target = $region49
    $region48: #{encoder_forward.1} parent=1 // pred_region
      _
    $region49: #{encoder_forward.1} parent=1 // pred_fallthru
      _
    %652 = vsyncpa [#allocation3], 1
    %653 = vsyncpa [#allocation5], 1
    %654 = vsyncpa [#allocation8], 1

</llo_original>
